<compile_context>
chip_gen: v6e
topology: v6e:2x2x1
jax: 0.10.0
libtpu: 0.0.40
codegen_flags: <defaults>
</compile_context>

<pallas_src>
import jax
import jax.numpy as jnp
from jax import lax
from jax.experimental import pallas as pl
from jax.experimental.pallas import tpu as pltpu

EPS = 1e-6


def _make_dice_partials_kernel(hw, t_hw, tiles_per_p, full_tiles, needs_mask):
    """Builds the kernel with static tile geometry baked in via closure."""

    def kernel(x_ref, t_ref, oi_ref, ox_ref, ot_ref, acc_i, acc_x, acc_t):
        p = pl.program_id(1)   # hw-half index (parallel)
        j = pl.program_id(2)   # hw-tile index within the half (reduction axis)

        @pl.when(j == 0)
        def _init():
            acc_i[...] = jnp.zeros_like(acc_i)
            acc_x[...] = jnp.zeros_like(acc_x)
            acc_t[...] = jnp.zeros_like(acc_t)

        def accumulate(masked):
            x = x_ref[0].astype(jnp.float32)   # (C, t_hw)
            t = t_ref[0].astype(jnp.float32)   # (C, t_hw); target.float() as in torch
            if masked:
                # Zero the out-of-range lanes BEFORE any product.  Also
                # neutralizes fully out-of-range overflow tiles (rem <= 0).
                g = p * tiles_per_p + j
                rem = hw - g * t_hw
                lane = lax.broadcasted_iota(jnp.int32, x.shape, 1)
                keep = lane < rem
                x = jnp.where(keep, x, 0.0)
                t = jnp.where(keep, t, 0.0)
            # Lane-axis reduction per step: ~1 VALU add per input vreg plus a
            # cross-lane reduce on the otherwise-idle XLU; accumulators stay
            # tiny (C, 1) so the inner loop has no large loads/stores.
            acc_i[...] += jnp.sum(x * t, axis=-1, keepdims=True)
            acc_x[...] += jnp.sum(x * x, axis=-1, keepdims=True)
            acc_t[...] += jnp.sum(t * t, axis=-1, keepdims=True)

        if needs_mask:
            g = p * tiles_per_p + j

            @pl.when(g < full_tiles)
            def _full_tile():
                accumulate(False)

            @pl.when(g >= full_tiles)
            def _ragged_tile():
                accumulate(True)
        else:
            accumulate(False)

        @pl.when(j == pl.num_programs(2) - 1)
        def _finalize():
            oi_ref[...] = acc_i[...][None, None]   # (1, 1, C, 1)
            ox_ref[...] = acc_x[...][None, None]
            ot_ref[...] = acc_t[...][None, None]

    return kernel


def dice_loss(x, target, *, t_hw=None):
    """x, target: (N, C, spatial...) arrays. Returns scalar dice loss (float32)."""
    assert x.shape == target.shape, "'input' and 'target' must have the same shape"
    N, C = x.shape[:2]
    HW = 1
    for d in x.shape[2:]:
        HW *= d

    # Free reshapes (NCHW is contiguous): no transpose, no pad, no upcast.
    xf = x.reshape(N, C, HW)
    tf = target.reshape(N, C, HW)

    # --- Tile width along the flattened spatial axis -------------------------
    # Live-VMEM model per flattened column: 2 inputs x 2 pipeline buffers in
    # the input dtype + ~3 f32-sized temporaries (casts / products).  A 24 MiB
    # live budget fits comfortably inside v7x's 64 MiB VMEM and trivially on
    # v5e/v6e (128 MiB); sub-32-bit inputs get proportionally wider tiles.
    if t_hw is None:
        c_pad = -(-C // 8) * 8
        itemsize = max(jnp.dtype(xf.dtype).itemsize, jnp.dtype(tf.dtype).itemsize)
        bytes_per_col = c_pad * (2 * 2 * itemsize + 3 * 4)
        live_budget = 24 * 1024 * 1024
        t_hw = max(128, (live_budget // bytes_per_col) // 128 * 128)
    if t_hw >= HW:
        t_hw = HW                                # single full-width tile (exempt from 128 rule)
    else:
        t_hw = max(128, (t_hw // 128) * 128)     # lane-aligned tiles

    n_tiles = pl.cdiv(HW, t_hw)

    # Second *parallel* axis splitting the hw-tile range in halves when the
    # batch axis alone cannot keep both v7x TensorCores busy (N == 1 / odd).
    P = 2 if (N % 2 == 1 and n_tiles >= 2) else 1
    tiles_per_p = pl.cdiv(n_tiles, P)
    full_tiles = HW // t_hw                      # tiles with no ragged tail
    needs_mask = (HW % t_hw != 0) or (P * tiles_per_p != n_tiles)

    kernel = _make_dice_partials_kernel(HW, t_hw, tiles_per_p, full_tiles, needs_mask)

    def in_map(n, p, j):
        # Clamp so overflow tiles (only when P*tiles_per_p > n_tiles) never
        # request a block past the array; they are fully masked in-kernel.
        return (n, 0, jnp.minimum(p * tiles_per_p + j, n_tiles - 1))

    part_shape = jax.ShapeDtypeStruct((N, P, C, 1), jnp.float32)
    part_spec = pl.BlockSpec((1, 1, C, 1), lambda n, p, j: (n, p, 0, 0))

    bytes_accessed = int(
        xf.size * xf.dtype.itemsize + tf.size * tf.dtype.itemsize + 3 * N * P * C * 4
    )
    cost = pl.CostEstimate(
        flops=int(6 * N * C * HW), transcendentals=0, bytes_accessed=bytes_accessed
    )

    pi, px, pt = pl.pallas_call(
        kernel,
        out_shape=(part_shape, part_shape, part_shape),
        grid_spec=pltpu.PrefetchScalarGridSpec(
            num_scalar_prefetch=0,
            grid=(N, P, tiles_per_p),
            in_specs=[
                pl.BlockSpec((1, C, t_hw), in_map),
                pl.BlockSpec((1, C, t_hw), in_map),
            ],
            out_specs=[part_spec, part_spec, part_spec],
            scratch_shapes=[
                pltpu.VMEM((C, 1), jnp.float32),
                pltpu.VMEM((C, 1), jnp.float32),
                pltpu.VMEM((C, 1), jnp.float32),
            ],
        ),
        compiler_params=pltpu.CompilerParams(
            # batch + hw-half axes parallel (megacore); tile axis is a reduction
            dimension_semantics=("parallel", "parallel", "arbitrary"),
            vmem_limit_bytes=48 * 1024 * 1024,
        ),
        cost_estimate=cost,
    )(xf, tf)

    # Tiny epilogue: combine per-(batch, half) partials into per-channel sums.
    intersect = jnp.sum(pi[..., 0], axis=(0, 1))      # (C,)
    sum_x2 = jnp.sum(px[..., 0], axis=(0, 1))         # (C,)
    sum_t2 = jnp.sum(pt[..., 0], axis=(0, 1))         # (C,)
    # TODO(synk): per-channel `weight` (module default is None) would multiply
    # `intersect` here.
    denom = jnp.maximum(sum_x2 + sum_t2, EPS)         # denominator.clamp(min=eps)
    dice = 2.0 * intersect / denom
    return 1.0 - jnp.mean(dice)


def _dice_loss_ref(x, target):
    """Pure-JAX reference mirroring the PyTorch code."""
    C = x.shape[1]
    perm = (1, 0) + tuple(range(2, x.ndim))
    xf = jnp.transpose(x, perm).reshape(C, -1).astype(jnp.float32)
    tf = jnp.transpose(target, perm).reshape(C, -1).astype(jnp.float32)
    intersect = jnp.sum(xf * tf, axis=-1)
    denom = jnp.maximum(jnp.sum(xf * xf, axis=-1) + jnp.sum(tf * tf, axis=-1), EPS)
    dice = 2.0 * intersect / denom
    return 1.0 - jnp.mean(dice)


if __name__ == "__main__":
    key = jax.random.PRNGKey(0)
    k1, k2, k3, k4 = jax.random.split(key, 4)

    # Primary case (module-like shapes): 128-aligned spatial, even batch.
    N, C, H, W = 2, 4, 16, 16
    # "input" assumed already-normalized probabilities (module applies no sigmoid)
    x = jax.nn.sigmoid(jax.random.normal(k1, (N, C, H, W), dtype=jnp.float32))
    target = (jax.random.uniform(k2, (N, C, H, W)) > 0.5).astype(jnp.float32)

    loss = jax.block_until_ready(dice_loss(x, target))
    ref = jax.block_until_ready(_dice_loss_ref(x, target))
    assert jnp.isfinite(loss), "non-finite loss"
    assert abs(float(loss) - float(ref)) < 1e-5, (float(loss), float(ref))

    # Robustness check: single batch (exercises the 2-way parallel hw split),
    # non-128-aligned spatial size with a forced small tile (exercises the
    # gated ragged-tile masking path).
    N2, C2, H2, W2 = 1, 3, 20, 20      # HW = 400
    x2 = jax.nn.sigmoid(jax.random.normal(k3, (N2, C2, H2, W2), dtype=jnp.float32))
    t2 = (jax.random.uniform(k4, (N2, C2, H2, W2)) > 0.5).astype(jnp.float32)
    loss2 = jax.block_until_ready(dice_loss(x2, t2, t_hw=128))
    ref2 = jax.block_until_ready(_dice_loss_ref(x2, t2))
    assert jnp.isfinite(loss2), "non-finite loss (ragged case)"
    assert abs(float(loss2) - float(ref2)) < 1e-5, (float(loss2), float(ref2))

    print("KERNEL_OK")
</pallas_src>

<mosaic_0001>
module attributes {stable_mosaic.version = 11 : i64} {
  func.func @kernel(%arg0: i32, %arg1: i32, %arg2: i32, %arg3: memref<1x4x256xf32, #tpu.memory_space<vmem>>, %arg4: memref<1x4x256xf32, #tpu.memory_space<vmem>>, %arg5: memref<1x1x4x1xf32, #tpu.memory_space<vmem>>, %arg6: memref<1x1x4x1xf32, #tpu.memory_space<vmem>>, %arg7: memref<1x1x4x1xf32, #tpu.memory_space<vmem>>, %arg8: memref<4x1xf32, #tpu.memory_space<vmem>>, %arg9: memref<4x1xf32, #tpu.memory_space<vmem>>, %arg10: memref<4x1xf32, #tpu.memory_space<vmem>>) attributes {dimension_semantics = [#tpu.dimension_semantics<parallel>, #tpu.dimension_semantics<parallel>, #tpu.dimension_semantics<arbitrary>], iteration_bounds = array<i64: 2, 1, 1>, scalar_prefetch = 0 : i64, scratch_operands = 3 : i64, tpu.core_type = #tpu.core_type<tc>, window_params = [{transform_indices = @transform_0, window_bounds = array<i64: 1, 4, 256>}, {transform_indices = @transform_1, window_bounds = array<i64: 1, 4, 256>}, {transform_indices = @transform_2, window_bounds = array<i64: 1, 1, 4, 1>}, {transform_indices = @transform_3, window_bounds = array<i64: 1, 1, 4, 1>}, {transform_indices = @transform_4, window_bounds = array<i64: 1, 1, 4, 1>}]} {
    %c0_i32 = arith.constant 0 : i32
    %0 = arith.cmpi eq, %arg2, %c0_i32 : i32
    %1 = arith.extui %0 : i1 to i32
    %c0_i32_0 = arith.constant 0 : i32
    %2 = arith.cmpi ne, %1, %c0_i32_0 : i32
    scf.if %2 {
      %cst_22 = arith.constant 0.000000e+00 : f32
      %28 = vector.broadcast %cst_22 : f32 to vector<4x1xf32>
      %c0_23 = arith.constant 0 : index
      %c0_24 = arith.constant 0 : index
      %29 = vector.load %arg8[%c0_23, %c0_24] : memref<4x1xf32, #tpu.memory_space<vmem>>, vector<4x1xf32>
      tpu.vector_store %arg8[%c0_23, %c0_24], %28 {strides = array<i32>} : memref<4x1xf32, #tpu.memory_space<vmem>>, vector<4x1xf32>,
      %cst_25 = arith.constant 0.000000e+00 : f32
      %30 = vector.broadcast %cst_25 : f32 to vector<4x1xf32>
      %c0_26 = arith.constant 0 : index
      %c0_27 = arith.constant 0 : index
      %31 = vector.load %arg9[%c0_26, %c0_27] : memref<4x1xf32, #tpu.memory_space<vmem>>, vector<4x1xf32>
      tpu.vector_store %arg9[%c0_26, %c0_27], %30 {strides = array<i32>} : memref<4x1xf32, #tpu.memory_space<vmem>>, vector<4x1xf32>,
      %cst_28 = arith.constant 0.000000e+00 : f32
      %32 = vector.broadcast %cst_28 : f32 to vector<4x1xf32>
      %c0_29 = arith.constant 0 : index
      %c0_30 = arith.constant 0 : index
      %33 = vector.load %arg10[%c0_29, %c0_30] : memref<4x1xf32, #tpu.memory_space<vmem>>, vector<4x1xf32>
      tpu.vector_store %arg10[%c0_29, %c0_30], %32 {strides = array<i32>} : memref<4x1xf32, #tpu.memory_space<vmem>>, vector<4x1xf32>,
    } else {
    }
    %c0 = arith.constant 0 : index
    %c0_1 = arith.constant 0 : index
    %c0_2 = arith.constant 0 : index
    %3 = vector.load %arg3[%c0, %c0_1, %c0_2] : memref<1x4x256xf32, #tpu.memory_space<vmem>>, vector<1x4x256xf32>
    %4 = vector.shape_cast %3 : vector<1x4x256xf32> to vector<4x256xf32>
    %c0_3 = arith.constant 0 : index
    %c0_4 = arith.constant 0 : index
    %c0_5 = arith.constant 0 : index
    %5 = vector.load %arg4[%c0_3, %c0_4, %c0_5] : memref<1x4x256xf32, #tpu.memory_space<vmem>>, vector<1x4x256xf32>
    %6 = vector.shape_cast %5 : vector<1x4x256xf32> to vector<4x256xf32>
    %c0_6 = arith.constant 0 : index
    %c0_7 = arith.constant 0 : index
    %7 = vector.load %arg8[%c0_6, %c0_7] : memref<4x1xf32, #tpu.memory_space<vmem>>, vector<4x1xf32>
    %8 = arith.mulf %4, %6 : vector<4x256xf32>
    %cst = arith.constant dense<0.000000e+00> : vector<4xf32>
    %9 = vector.multi_reduction <add>, %8, %cst [1] : vector<4x256xf32> to vector<4xf32>
    %10 = vector.shape_cast %9 : vector<4xf32> to vector<4x1xf32>
    %11 = arith.addf %7, %10 : vector<4x1xf32>
    %c0_8 = arith.constant 0 : index
    %c0_9 = arith.constant 0 : index
    %12 = vector.load %arg8[%c0_8, %c0_9] : memref<4x1xf32, #tpu.memory_space<vmem>>, vector<4x1xf32>
    tpu.vector_store %arg8[%c0_8, %c0_9], %11 {strides = array<i32>} : memref<4x1xf32, #tpu.memory_space<vmem>>, vector<4x1xf32>,
    %c0_10 = arith.constant 0 : index
    %c0_11 = arith.constant 0 : index
    %13 = vector.load %arg9[%c0_10, %c0_11] : memref<4x1xf32, #tpu.memory_space<vmem>>, vector<4x1xf32>
    %14 = arith.mulf %4, %4 : vector<4x256xf32>
    %cst_12 = arith.constant dense<0.000000e+00> : vector<4xf32>
    %15 = vector.multi_reduction <add>, %14, %cst_12 [1] : vector<4x256xf32> to vector<4xf32>
    %16 = vector.shape_cast %15 : vector<4xf32> to vector<4x1xf32>
    %17 = arith.addf %13, %16 : vector<4x1xf32>
    %c0_13 = arith.constant 0 : index
    %c0_14 = arith.constant 0 : index
    %18 = vector.load %arg9[%c0_13, %c0_14] : memref<4x1xf32, #tpu.memory_space<vmem>>, vector<4x1xf32>
    tpu.vector_store %arg9[%c0_13, %c0_14], %17 {strides = array<i32>} : memref<4x1xf32, #tpu.memory_space<vmem>>, vector<4x1xf32>,
    %c0_15 = arith.constant 0 : index
    %c0_16 = arith.constant 0 : index
    %19 = vector.load %arg10[%c0_15, %c0_16] : memref<4x1xf32, #tpu.memory_space<vmem>>, vector<4x1xf32>
    %20 = arith.mulf %6, %6 : vector<4x256xf32>
    %cst_17 = arith.constant dense<0.000000e+00> : vector<4xf32>
    %21 = vector.multi_reduction <add>, %20, %cst_17 [1] : vector<4x256xf32> to vector<4xf32>
    %22 = vector.shape_cast %21 : vector<4xf32> to vector<4x1xf32>
    %23 = arith.addf %19, %22 : vector<4x1xf32>
    %c0_18 = arith.constant 0 : index
    %c0_19 = arith.constant 0 : index
    %24 = vector.load %arg10[%c0_18, %c0_19] : memref<4x1xf32, #tpu.memory_space<vmem>>, vector<4x1xf32>
    tpu.vector_store %arg10[%c0_18, %c0_19], %23 {strides = array<i32>} : memref<4x1xf32, #tpu.memory_space<vmem>>, vector<4x1xf32>,
    %c0_i32_20 = arith.constant 0 : i32
    %25 = arith.cmpi eq, %arg2, %c0_i32_20 : i32
    %26 = arith.extui %25 : i1 to i32
    %c0_i32_21 = arith.constant 0 : i32
    %27 = arith.cmpi ne, %26, %c0_i32_21 : i32
    scf.if %27 {
      %c0_22 = arith.constant 0 : index
      %c0_23 = arith.constant 0 : index
      %28 = vector.load %arg8[%c0_22, %c0_23] : memref<4x1xf32, #tpu.memory_space<vmem>>, vector<4x1xf32>
      %29 = vector.shape_cast %28 : vector<4x1xf32> to vector<1x1x4x1xf32>
      %c0_24 = arith.constant 0 : index
      %c0_25 = arith.constant 0 : index
      %c0_26 = arith.constant 0 : index
      %c0_27 = arith.constant 0 : index
      %30 = vector.load %arg5[%c0_24, %c0_25, %c0_26, %c0_27] : memref<1x1x4x1xf32, #tpu.memory_space<vmem>>, vector<1x1x4x1xf32>
      tpu.vector_store %arg5[%c0_24, %c0_25, %c0_26, %c0_27], %29 {strides = array<i32>} : memref<1x1x4x1xf32, #tpu.memory_space<vmem>>, vector<1x1x4x1xf32>,
      %c0_28 = arith.constant 0 : index
      %c0_29 = arith.constant 0 : index
      %31 = vector.load %arg9[%c0_28, %c0_29] : memref<4x1xf32, #tpu.memory_space<vmem>>, vector<4x1xf32>
      %32 = vector.shape_cast %31 : vector<4x1xf32> to vector<1x1x4x1xf32>
      %c0_30 = arith.constant 0 : index
      %c0_31 = arith.constant 0 : index
      %c0_32 = arith.constant 0 : index
      %c0_33 = arith.constant 0 : index
      %33 = vector.load %arg6[%c0_30, %c0_31, %c0_32, %c0_33] : memref<1x1x4x1xf32, #tpu.memory_space<vmem>>, vector<1x1x4x1xf32>
      tpu.vector_store %arg6[%c0_30, %c0_31, %c0_32, %c0_33], %32 {strides = array<i32>} : memref<1x1x4x1xf32, #tpu.memory_space<vmem>>, vector<1x1x4x1xf32>,
      %c0_34 = arith.constant 0 : index
      %c0_35 = arith.constant 0 : index
      %34 = vector.load %arg10[%c0_34, %c0_35] : memref<4x1xf32, #tpu.memory_space<vmem>>, vector<4x1xf32>
      %35 = vector.shape_cast %34 : vector<4x1xf32> to vector<1x1x4x1xf32>
      %c0_36 = arith.constant 0 : index
      %c0_37 = arith.constant 0 : index
      %c0_38 = arith.constant 0 : index
      %c0_39 = arith.constant 0 : index
      %36 = vector.load %arg7[%c0_36, %c0_37, %c0_38, %c0_39] : memref<1x1x4x1xf32, #tpu.memory_space<vmem>>, vector<1x1x4x1xf32>
      tpu.vector_store %arg7[%c0_36, %c0_37, %c0_38, %c0_39], %35 {strides = array<i32>} : memref<1x1x4x1xf32, #tpu.memory_space<vmem>>, vector<1x1x4x1xf32>,
    } else {
    }
    return
  }
  func.func @transform_0(%arg0: i32, %arg1: i32, %arg2: i32) -> (i32, i32, i32) {
    %c1_i32 = arith.constant 1 : i32
    %0 = arith.muli %arg1, %c1_i32 : i32
    %1 = arith.addi %0, %arg2 : i32
    %c0_i32 = arith.constant 0 : i32
    %2 = arith.minsi %1, %c0_i32 : i32
    %c0_i32_0 = arith.constant 0 : i32
    %c0_i32_1 = arith.constant 0 : i32
    return %arg0, %c0_i32_0, %2 : i32, i32, i32
  }
  func.func @transform_1(%arg0: i32, %arg1: i32, %arg2: i32) -> (i32, i32, i32) {
    %c1_i32 = arith.constant 1 : i32
    %0 = arith.muli %arg1, %c1_i32 : i32
    %1 = arith.addi %0, %arg2 : i32
    %c0_i32 = arith.constant 0 : i32
    %2 = arith.minsi %1, %c0_i32 : i32
    %c0_i32_0 = arith.constant 0 : i32
    %c0_i32_1 = arith.constant 0 : i32
    return %arg0, %c0_i32_0, %2 : i32, i32, i32
  }
  func.func @transform_2(%arg0: i32, %arg1: i32, %arg2: i32) -> (i32, i32, i32, i32) {
    %c0_i32 = arith.constant 0 : i32
    %c0_i32_0 = arith.constant 0 : i32
    %c0_i32_1 = arith.constant 0 : i32
    return %arg0, %arg1, %c0_i32, %c0_i32_0 : i32, i32, i32, i32
  }
  func.func @transform_3(%arg0: i32, %arg1: i32, %arg2: i32) -> (i32, i32, i32, i32) {
    %c0_i32 = arith.constant 0 : i32
    %c0_i32_0 = arith.constant 0 : i32
    %c0_i32_1 = arith.constant 0 : i32
    return %arg0, %arg1, %c0_i32, %c0_i32_0 : i32, i32, i32, i32
  }
  func.func @transform_4(%arg0: i32, %arg1: i32, %arg2: i32) -> (i32, i32, i32, i32) {
    %c0_i32 = arith.constant 0 : i32
    %c0_i32_0 = arith.constant 0 : i32
    %c0_i32_1 = arith.constant 0 : i32
    return %arg0, %arg1, %c0_i32, %c0_i32_0 : i32, i32, i32, i32
  }
}

</mosaic_0001>

<llo_original>
// kernel: tpu_custom_call.1
$region0: #{tpu_custom_call.1}
  #allocation0 [shape = 'u32[]', space=smem, size = 0x4, offset = 0x4, fixed_abs, tag = 'smem constant byte address 0x4 - core index']
  #allocation1 [shape = 'u32[144,128]{1,0:T(1,128)}', space=vmem, size = 0x12000, scoped, tag = 'internal scratch']
  #allocation2 [shape = 'f32[4,1]{1,0:T(4,128)}', space=vmem, size = 0x800, scoped, tag = 'scratch operand']
  #allocation3 [shape = 'f32[4,1]{1,0:T(4,128)}', space=vmem, size = 0x800, scoped, tag = 'scratch operand']
  #allocation4 [shape = 'f32[4,1]{1,0:T(4,128)}', space=vmem, size = 0x800, scoped, tag = 'scratch operand']
  %s0 = inlined_call_operand.hbm [shape: f32[2,4,256], index: 0, kind: input, shape index: {}]
  %s1 = inlined_call_operand.hbm [shape: f32[2,4,256], index: 1, kind: input, shape index: {}]
  %s2 = inlined_call_operand.vmem [shape: f32[2,1,4,1], index: 2, kind: output, shape index: {0}]
  %s3 = inlined_call_operand.vmem [shape: f32[2,1,4,1], index: 3, kind: output, shape index: {1}]
  %s4 = inlined_call_operand.vmem [shape: f32[2,1,4,1], index: 4, kind: output, shape index: {2}]
  %5 = xla_tuple %s2, %s3, %s4
  %s6 = sld [smem:[#allocation0]]
  $region73: #{tpu_custom_call.1} parent=0
    _
  %s8 = ssub.s32 1, %s6
  %s9 = scalar_select 0, %s8, %s6
  $region1: #{tpu_custom_call.1} parent=0
    #allocation5 [shape = 'u8[8192]{0}', space=vmem, size = 0x2000, scoped, tag = 'input window, operand 0']
    #allocation6 [shape = 's32[2]{0}', space=sflag, size = 0x8, scoped, tag = 'scoped memory for tpu_custom_call.1']
    #allocation7 [shape = 'u8[8192]{0}', space=vmem, size = 0x2000, scoped, tag = 'input window, operand 1']
    #allocation8 [shape = 's32[2]{0}', space=sflag, size = 0x8, scoped, tag = 'scoped memory for tpu_custom_call.1']
    %10 = vsyncpa [#allocation6], 0
    %s11 = scalar_lea.sflag [#allocation6], 1
    %12 = vsyncpa %s11, 0
    %13 = vsyncpa [#allocation8], 0
    %s14 = scalar_lea.sflag [#allocation8], 1
    %15 = vsyncpa %s14, 0
    loop: start=0, step=1, limit=4
    $region2: #{tpu_custom_call.1} parent=1 // loop_pre_header
      _
    $region3: #{tpu_custom_call.1} parent=1 // loop_header
      %s17 = sphi 0, %s21
      %p18 = scmp.ge.s32.totalorder %s17, 4
      %s24 = sphi 0, %s43
      %s25 = sphi 0, %s39
      %s26 = sphi 0, %s35
      %s27 = sphi 0, %s24
      %s28 = sphi 0, %s25
      %s29 = sphi 0, %s26
      %s30 = sphi 0, %s27
      %s31 = sphi 0, %s28
      %s32 = sphi 0, %s29
      %s54 = sphi 0, %s56
      %s57 = sphi 0, %s54
      %s58 = sphi 0, %s57
      %s74 = sphi 0, %s58
      %s88 = sphi 0, %s90
      %s91 = sphi 0, %s88
      %s92 = sphi 0, %s91
      %s108 = sphi 0, %s92
      %s116 = sphi 0, %s118
      %s119 = sphi 0, %s116
      %s120 = sphi 0, %s119
      %s136 = sphi 0, %s120
      %s144 = sphi 0, %s146
      %s147 = sphi 0, %s144
      %s148 = sphi 0, %s147
      %s164 = sphi 0, %s148
      %s172 = sphi 0, %s174
      %s175 = sphi 0, %s172
      %s176 = sphi 0, %s175
      %s192 = sphi 0, %s176
    $region4: #{tpu_custom_call.1} parent=1 // loop_header_branch
      %20 = sbr.rel (%p18) target = $region8
    $region5: #{tpu_custom_call.1} parent=1 // loop_body
      %s22 = ssub.s32 %s17, 1
      %s23 = ssub.s32 %s17, 2
      %s33 = sadd.s32 1, %s26
      %p34 = scmp.ge.s32.totalorder %s33, 1
      %s35 = scalar_select %p34, 0, %s33
      %s36 = sadd.s32 1, %s25
      %s37 = scalar_select %p34, %s36, %s25
      %p38 = scmp.ge.s32.totalorder %s37, 1
      %s39 = scalar_select %p38, 0, %s37
      %s40 = sadd.s32 1, %s24
      %s41 = scalar_select %p38, %s40, %s24
      %p42 = scmp.ge.s32.totalorder %s41, 2
      %s43 = scalar_select %p42, 0, %s41
      %s44 = sadd.s32 %s25, %s26
      %p45 = scmp.lt.s32.totalorder %s44, 0
      %s46 = scalar_select %p45, %s44, 0
      %s47 = sadd.s32 %s39, %s35
      %p48 = scmp.lt.s32.totalorder %s47, 0
      %s49 = scalar_select %p48, %s47, 0
      %s50 = ssub.s32 %s24, %s43
      %s51 = ssub.s32 %s46, %s49
      %s52 = sor.u32 %s50, %s51
      %p53 = scmp.eq.s32.totalorder %s52, 0
      %s55 = sadd.s32 %s54, 1
      %s56 = scalar_select %p53, %s54, %s55
      %p59 = pneg %p53
      %p60 = scmp.eq.s32.totalorder %s17, 1
      %p61 = por %p59, %p60
      %p62 = scmp.ne.s32.totalorder %s54, %s57
      %p63 = scmp.eq.s32.totalorder %s17, 0
      %p64 = por %p62, %p63
      %p65 = scmp.ne.s32.totalorder %s54, %s57
      %p66 = scmp.eq.s32.totalorder %s22, 1
      %p67 = por %p65, %p66
      %p68 = scmp.ne.s32.totalorder %s57, %s58
      %p69 = scmp.eq.s32.totalorder %s22, 0
      %p70 = por %p68, %p69
      %p71 = scmp.ne.s32.totalorder %s57, %s58
      %p72 = scmp.eq.s32.totalorder %s23, 1
      %p73 = por %p71, %p72
      %p75 = scmp.ne.s32.totalorder %s58, %s74
      %p76 = scmp.eq.s32.totalorder %s23, 0
      %p77 = por %p75, %p76
      %s78 = sadd.s32 %s25, %s26
      %p79 = scmp.lt.s32.totalorder %s78, 0
      %s80 = scalar_select %p79, %s78, 0
      %s81 = sadd.s32 %s39, %s35
      %p82 = scmp.lt.s32.totalorder %s81, 0
      %s83 = scalar_select %p82, %s81, 0
      %s84 = ssub.s32 %s24, %s43
      %s85 = ssub.s32 %s80, %s83
      %s86 = sor.u32 %s84, %s85
      %p87 = scmp.eq.s32.totalorder %s86, 0
      %s89 = sadd.s32 %s88, 1
      %s90 = scalar_select %p87, %s88, %s89
      %p93 = pneg %p87
      %p94 = scmp.eq.s32.totalorder %s17, 1
      %p95 = por %p93, %p94
      %p96 = scmp.ne.s32.totalorder %s88, %s91
      %p97 = scmp.eq.s32.totalorder %s17, 0
      %p98 = por %p96, %p97
      %p99 = scmp.ne.s32.totalorder %s88, %s91
      %p100 = scmp.eq.s32.totalorder %s22, 1
      %p101 = por %p99, %p100
      %p102 = scmp.ne.s32.totalorder %s91, %s92
      %p103 = scmp.eq.s32.totalorder %s22, 0
      %p104 = por %p102, %p103
      %p105 = scmp.ne.s32.totalorder %s91, %s92
      %p106 = scmp.eq.s32.totalorder %s23, 1
      %p107 = por %p105, %p106
      %p109 = scmp.ne.s32.totalorder %s92, %s108
      %p110 = scmp.eq.s32.totalorder %s23, 0
      %p111 = por %p109, %p110
      %s112 = ssub.s32 %s24, %s43
      %s113 = ssub.s32 %s25, %s39
      %s114 = sor.u32 %s112, %s113
      %p115 = scmp.eq.s32.totalorder %s114, 0
      %s117 = sadd.s32 %s116, 1
      %s118 = scalar_select %p115, %s116, %s117
      %p121 = pneg %p115
      %p122 = scmp.eq.s32.totalorder %s17, 1
      %p123 = por %p121, %p122
      %p124 = scmp.ne.s32.totalorder %s116, %s119
      %p125 = scmp.eq.s32.totalorder %s17, 0
      %p126 = por %p124, %p125
      %p127 = scmp.ne.s32.totalorder %s116, %s119
      %p128 = scmp.eq.s32.totalorder %s22, 1
      %p129 = por %p127, %p128
      %p130 = scmp.ne.s32.totalorder %s119, %s120
      %p131 = scmp.eq.s32.totalorder %s22, 0
      %p132 = por %p130, %p131
      %p133 = scmp.ne.s32.totalorder %s119, %s120
      %p134 = scmp.eq.s32.totalorder %s23, 1
      %p135 = por %p133, %p134
      %p137 = scmp.ne.s32.totalorder %s120, %s136
      %p138 = scmp.eq.s32.totalorder %s23, 0
      %p139 = por %p137, %p138
      %s140 = ssub.s32 %s24, %s43
      %s141 = ssub.s32 %s25, %s39
      %s142 = sor.u32 %s140, %s141
      %p143 = scmp.eq.s32.totalorder %s142, 0
      %s145 = sadd.s32 %s144, 1
      %s146 = scalar_select %p143, %s144, %s145
      %p149 = pneg %p143
      %p150 = scmp.eq.s32.totalorder %s17, 1
      %p151 = por %p149, %p150
      %p152 = scmp.ne.s32.totalorder %s144, %s147
      %p153 = scmp.eq.s32.totalorder %s17, 0
      %p154 = por %p152, %p153
      %p155 = scmp.ne.s32.totalorder %s144, %s147
      %p156 = scmp.eq.s32.totalorder %s22, 1
      %p157 = por %p155, %p156
      %p158 = scmp.ne.s32.totalorder %s147, %s148
      %p159 = scmp.eq.s32.totalorder %s22, 0
      %p160 = por %p158, %p159
      %p161 = scmp.ne.s32.totalorder %s147, %s148
      %p162 = scmp.eq.s32.totalorder %s23, 1
      %p163 = por %p161, %p162
      %p165 = scmp.ne.s32.totalorder %s148, %s164
      %p166 = scmp.eq.s32.totalorder %s23, 0
      %p167 = por %p165, %p166
      %s168 = ssub.s32 %s24, %s43
      %s169 = ssub.s32 %s25, %s39
      %s170 = sor.u32 %s168, %s169
      %p171 = scmp.eq.s32.totalorder %s170, 0
      %s173 = sadd.s32 %s172, 1
      %s174 = scalar_select %p171, %s172, %s173
      %p177 = pneg %p171
      %p178 = scmp.eq.s32.totalorder %s17, 1
      %p179 = por %p177, %p178
      %p180 = scmp.ne.s32.totalorder %s172, %s175
      %p181 = scmp.eq.s32.totalorder %s17, 0
      %p182 = por %p180, %p181
      %p183 = scmp.ne.s32.totalorder %s172, %s175
      %p184 = scmp.eq.s32.totalorder %s22, 1
      %p185 = por %p183, %p184
      %p186 = scmp.ne.s32.totalorder %s175, %s176
      %p187 = scmp.eq.s32.totalorder %s22, 0
      %p188 = por %p186, %p187
      %p189 = scmp.ne.s32.totalorder %s175, %s176
      %p190 = scmp.eq.s32.totalorder %s23, 1
      %p191 = por %p189, %p190
      %p193 = scmp.ne.s32.totalorder %s176, %s192
      %p194 = scmp.eq.s32.totalorder %s23, 0
      %p195 = por %p193, %p194
      %p196 = scmp.le.s32.totalorder 1, %s17
      %p197 = scmp.lt.s32.totalorder %s17, 3
      %p198 = pnand %p196, %p197
      %p199 = pneg %p198
      // Predicated region
      $region9: #{tpu_custom_call.1} parent=5 // pred_check
        _
      $region10: #{tpu_custom_call.1} parent=5 // pred_check_branch
        %201 = sbr.rel (%p198) target = $region12
      $region11: #{tpu_custom_call.1} parent=5 // pred_region
        %s202 = ssub.s32 %s17, 1
      $region12: #{tpu_custom_call.1} parent=5 // pred_fallthru
        _
      %p203 = scmp.lt.s32.totalorder %s17, 2
      // Predicated region
      $region13: #{tpu_custom_call.1} parent=5 // pred_check
        %p204 = pneg %p203
      $region14: #{tpu_custom_call.1} parent=5 // pred_check_branch
        %206 = sbr.rel (%p204) target = $region16
      $region15: #{tpu_custom_call.1} parent=5 // pred_region
        // Predicated region
        $region17: #{tpu_custom_call.1} parent=15 // pred_check
          %p207 = pneg %p64
        $region18: #{tpu_custom_call.1} parent=15 // pred_check_branch
          %209 = sbr.rel (%p207) target = $region20
        $region19: #{tpu_custom_call.1} parent=15 // pred_region
          %s210 = sand.u32 %s54, 1
          %s211 = scalar_lea.sflag [#allocation6], %s210
          %s212 = sand.u32 %s54, 1
          %s213 = smul.addr %s212, 8
          %s214 = scalar_lea.vmem [#allocation5], %s213
          %s215 = sadd.s32 %s25, %s26
          %p216 = scmp.lt.s32.totalorder %s215, 0
          %s217 = scalar_select %p216, %s215, 0
          %s218 = smul.u32 2, %s217
          %s220 = ssub.s32 128, 128
          %221 = vsyncadd %s211, %s220
          %s222 = smul.addr %s24, 2
          %s223 = sadd.s32 %s218, %s222
          %s224 = smul.addr %s223, 64
          %s225 = scalar_lea.hbm %s0, %s224
          %s227 = sshll.u32 %s214, 4
          %s228 = int_to_ptr.vmem [resolvable:$true] %s227
          %230 = dma.hbm_to_vmem [thread:$0]  %s225, 128, %s228, %s211
        $region20: #{tpu_custom_call.1} parent=15 // pred_fallthru
          _
        // Predicated region
        $region21: #{tpu_custom_call.1} parent=15 // pred_check
          %p231 = pneg %p98
        $region22: #{tpu_custom_call.1} parent=15 // pred_check_branch
          %233 = sbr.rel (%p231) target = $region24
        $region23: #{tpu_custom_call.1} parent=15 // pred_region
          %s234 = sand.u32 %s88, 1
          %s235 = scalar_lea.sflag [#allocation8], %s234
          %s236 = sand.u32 %s88, 1
          %s237 = smul.addr %s236, 8
          %s238 = scalar_lea.vmem [#allocation7], %s237
          %s239 = sadd.s32 %s25, %s26
          %p240 = scmp.lt.s32.totalorder %s239, 0
          %s241 = scalar_select %p240, %s239, 0
          %s242 = smul.u32 2, %s241
          %s244 = ssub.s32 128, 128
          %245 = vsyncadd %s235, %s244
          %s246 = smul.addr %s24, 2
          %s247 = sadd.s32 %s242, %s246
          %s248 = smul.addr %s247, 64
          %s249 = scalar_lea.hbm %s1, %s248
          %s251 = sshll.u32 %s238, 4
          %s252 = int_to_ptr.vmem [resolvable:$true] %s251
          %254 = dma.hbm_to_vmem [thread:$0]  %s249, 128, %s252, %s235
        $region24: #{tpu_custom_call.1} parent=15 // pred_fallthru
          _
      $region16: #{tpu_custom_call.1} parent=5 // pred_fallthru
        _
      %p255 = scmp.le.s32.totalorder 1, %s17
      %p256 = scmp.lt.s32.totalorder %s17, 3
      %p257 = pnand %p255, %p256
      %p258 = pneg %p257
      // Predicated region
      $region25: #{tpu_custom_call.1} parent=5 // pred_check
        _
      $region26: #{tpu_custom_call.1} parent=5 // pred_check_branch
        %260 = sbr.rel (%p257) target = $region28
      $region27: #{tpu_custom_call.1} parent=5 // pred_region
        %s261 = ssub.s32 %s17, 1
        %s262 = sand.u32 %s57, 1
        %s263 = scalar_lea.sflag [#allocation6], %s262
        %s264 = sand.u32 %s57, 1
        %s265 = smul.addr %s264, 8
        %s266 = scalar_lea.vmem [#allocation5], %s265
        // Predicated region
        $region29: #{tpu_custom_call.1} parent=27 // pred_check
          %p267 = pneg %p70
        $region30: #{tpu_custom_call.1} parent=27 // pred_check_branch
          %269 = sbr.rel (%p267) target = $region32
        $region31: #{tpu_custom_call.1} parent=27 // pred_region
          %270 = dma.done %s263, 128
        $region32: #{tpu_custom_call.1} parent=27 // pred_fallthru
          _
        %s271 = sand.u32 %s91, 1
        %s272 = scalar_lea.sflag [#allocation8], %s271
        %s273 = sand.u32 %s91, 1
        %s274 = smul.addr %s273, 8
        %s275 = scalar_lea.vmem [#allocation7], %s274
        // Predicated region
        $region33: #{tpu_custom_call.1} parent=27 // pred_check
          %p276 = pneg %p104
        $region34: #{tpu_custom_call.1} parent=27 // pred_check_branch
          %278 = sbr.rel (%p276) target = $region36
        $region35: #{tpu_custom_call.1} parent=27 // pred_region
          %279 = dma.done %s272, 128
        $region36: #{tpu_custom_call.1} parent=27 // pred_fallthru
          _
        %s280 = sand.u32 %s57, 1
        %s281 = scalar_lea.sflag [#allocation6], %s280
        %s282 = sand.u32 %s57, 1
        %s283 = smul.addr %s282, 8
        %s284 = scalar_lea.vmem [#allocation5], %s283
        %p285 = pneg %p70
        %p286 = pneg %p67
        %s287 = sand.u32 %s91, 1
        %s288 = scalar_lea.sflag [#allocation8], %s287
        %s289 = sand.u32 %s91, 1
        %s290 = smul.addr %s289, 8
        %s291 = scalar_lea.vmem [#allocation7], %s290
        %p292 = pneg %p104
        %p293 = pneg %p101
        %p294 = pneg %p132
        %p295 = pneg %p129
        %p296 = scmp.lt.s32.totalorder %s27, 1
        %s297 = scalar_select %p296, %s27, 1
        %p298 = scmp.lt.s32.totalorder %s28, 0
        %s299 = scalar_select %p298, %s28, 0
        %s300 = sadd.s32 %s299, %s297
        %s301 = smul.addr %s300, 4
        %s302 = scalar_lea.vmem %s2, %s301
        %p303 = pneg %p160
        %p304 = pneg %p157
        %p305 = scmp.lt.s32.totalorder %s27, 1
        %s306 = scalar_select %p305, %s27, 1
        %p307 = scmp.lt.s32.totalorder %s28, 0
        %s308 = scalar_select %p307, %s28, 0
        %s309 = sadd.s32 %s308, %s306
        %s310 = smul.addr %s309, 4
        %s311 = scalar_lea.vmem %s3, %s310
        %p312 = pneg %p188
        %p313 = pneg %p185
        %p314 = scmp.lt.s32.totalorder %s27, 1
        %s315 = scalar_select %p314, %s27, 1
        %p316 = scmp.lt.s32.totalorder %s28, 0
        %s317 = scalar_select %p316, %s28, 0
        %s318 = sadd.s32 %s317, %s315
        %s319 = smul.addr %s318, 4
        %s320 = scalar_lea.vmem %s4, %s319
        %s321 = sadd.s32 %s28, %s29
        %p322 = scmp.lt.s32.totalorder %s321, 0
        %s323 = scalar_select %p322, %s321, 0
        %s324 = smul.u32 2, %s323
        %s325 = sadd.s32 %s28, %s29
        %p326 = scmp.lt.s32.totalorder %s325, 0
        %s327 = scalar_select %p326, %s325, 0
        %s328 = smul.u32 2, %s327
        %p329 = scmp.lt.s32.totalorder %s27, 1
        %s330 = scalar_select %p329, %s27, 1
        %p331 = scmp.lt.s32.totalorder %s28, 0
        %s332 = scalar_select %p331, %s28, 0
        %s333 = sadd.s32 %s332, %s330
        %s334 = smul.addr %s333, 4
        %s335 = scalar_lea.vmem %s2, %s334
        %p336 = scmp.lt.s32.totalorder %s27, 1
        %s337 = scalar_select %p336, %s27, 1
        %p338 = scmp.lt.s32.totalorder %s28, 0
        %s339 = scalar_select %p338, %s28, 0
        %s340 = sadd.s32 %s339, %s337
        %s341 = smul.addr %s340, 4
        %s342 = scalar_lea.vmem %s3, %s341
        %p343 = scmp.lt.s32.totalorder %s27, 1
        %s344 = scalar_select %p343, %s27, 1
        %p345 = scmp.lt.s32.totalorder %s28, 0
        %s346 = scalar_select %p345, %s28, 0
        %s347 = sadd.s32 %s346, %s344
        %s348 = smul.addr %s347, 4
        %s349 = scalar_lea.vmem %s4, %s348
        %p350 = scmp.eq.s32.totalorder %s29, 0
        // Predicated region
        $region37: #{tpu_custom_call.1} parent=27 // pred_check
          %p351 = pneg %p350
        $region38: #{tpu_custom_call.1} parent=27 // pred_check_branch
          %353 = sbr.rel (%p351) target = $region40
        $region39: #{tpu_custom_call.1} parent=27 // pred_region
          %vm354 = vcmask 3072
          %355 = vst.msk [vmem:[#allocation2] sm:$0xf] %vm354, 0.0
          %356 = vst.msk [vmem:[#allocation3] sm:$0xf] %vm354, 0.0
          %357 = vst.msk [vmem:[#allocation4] sm:$0xf] %vm354, 0.0
        $region40: #{tpu_custom_call.1} parent=27 // pred_fallthru
          _
        %v358 = vld [vmem:[%s266] sm:$0xff]
        %v359 = vld [vmem:[%s275] sm:$0xff]
        %v360 = vld [vmem:[#allocation2] sm:$0xf]
        %v361 = vmul.f32 %v358, %v359
        %v363 = vcombine.high %v361, %v361
        %vm365 = vcmask 1043456
        %v366 = vsel %vm365, %v361, 0.0
        %v367 = vsel %vm365, %v363, 0.0
        %v368 = vadd.f32 %v366, %v367
        %369 = vadd.xlane.f32.xlu0 %v368
        %v370 = vpop.xlane.xlu0 %369
        %v371 = vadd.f32 %v360, %v370
        %vm372 = vcmask 3072
        %373 = vst.msk [vmem:[#allocation2] sm:$0xf] %vm372, %v371
        %v374 = vld [vmem:[#allocation3] sm:$0xf]
        %v375 = vmul.f32 %v358, %v358
        %v377 = vcombine.high %v375, %v375
        %v379 = vsel %vm365, %v375, 0.0
        %v380 = vsel %vm365, %v377, 0.0
        %v381 = vadd.f32 %v379, %v380
        %382 = vadd.xlane.f32.xlu0 %v381
        %v383 = vpop.xlane.xlu0 %382
        %v384 = vadd.f32 %v374, %v383
        %385 = vst.msk [vmem:[#allocation3] sm:$0xf] %vm372, %v384
        %v386 = vld [vmem:[#allocation4] sm:$0xf]
        %v387 = vmul.f32 %v359, %v359
        %v389 = vcombine.high %v387, %v387
        %v391 = vsel %vm365, %v387, 0.0
        %v392 = vsel %vm365, %v389, 0.0
        %v393 = vadd.f32 %v391, %v392
        %394 = vadd.xlane.f32.xlu0 %v393
        %v395 = vpop.xlane.xlu0 %394
        %v396 = vadd.f32 %v386, %v395
        %397 = vst.msk [vmem:[#allocation4] sm:$0xf] %vm372, %v396
        // Predicated region
        $region41: #{tpu_custom_call.1} parent=27 // pred_check
          %p398 = pneg %p350
        $region42: #{tpu_custom_call.1} parent=27 // pred_check_branch
          %400 = sbr.rel (%p398) target = $region44
        $region43: #{tpu_custom_call.1} parent=27 // pred_region
          %v401 = vld [vmem:[#allocation2] sm:$0xf]
          %402 = vst.msk [vmem:[%s335] sm:$0xf] %vm372, %v401
          %v403 = vld [vmem:[#allocation3] sm:$0xf]
          %404 = vst.msk [vmem:[%s342] sm:$0xf] %vm372, %v403
          %v405 = vld [vmem:[#allocation4] sm:$0xf]
          %406 = vst.msk [vmem:[%s349] sm:$0xf] %vm372, %v405
        $region44: #{tpu_custom_call.1} parent=27 // pred_fallthru
          _
        %p407 = scmp.lt.s32.totalorder %s27, 1
        %s408 = scalar_select %p407, %s27, 1
        %p409 = scmp.lt.s32.totalorder %s28, 0
        %s410 = scalar_select %p409, %s28, 0
        %s411 = sadd.s32 %s410, %s408
        %s412 = smul.addr %s411, 4
        %s413 = scalar_lea.vmem %s2, %s412
        %p414 = scmp.lt.s32.totalorder %s27, 1
        %s415 = scalar_select %p414, %s27, 1
        %p416 = scmp.lt.s32.totalorder %s28, 0
        %s417 = scalar_select %p416, %s28, 0
        %s418 = sadd.s32 %s417, %s415
        %s419 = smul.addr %s418, 4
        %s420 = scalar_lea.vmem %s3, %s419
        %p421 = scmp.lt.s32.totalorder %s27, 1
        %s422 = scalar_select %p421, %s27, 1
        %p423 = scmp.lt.s32.totalorder %s28, 0
        %s424 = scalar_select %p423, %s28, 0
        %s425 = sadd.s32 %s424, %s422
        %s426 = smul.addr %s425, 4
        %s427 = scalar_lea.vmem %s4, %s426
        // Predicated region
        $region45: #{tpu_custom_call.1} parent=27 // pred_check
          %p428 = pneg %p129
        $region46: #{tpu_custom_call.1} parent=27 // pred_check_branch
          %430 = sbr.rel (%p428) target = $region48
        $region47: #{tpu_custom_call.1} parent=27 // pred_region
          _
        $region48: #{tpu_custom_call.1} parent=27 // pred_fallthru
          _
        // Predicated region
        $region49: #{tpu_custom_call.1} parent=27 // pred_check
          %p431 = pneg %p157
        $region50: #{tpu_custom_call.1} parent=27 // pred_check_branch
          %433 = sbr.rel (%p431) target = $region52
        $region51: #{tpu_custom_call.1} parent=27 // pred_region
          _
        $region52: #{tpu_custom_call.1} parent=27 // pred_fallthru
          _
        // Predicated region
        $region53: #{tpu_custom_call.1} parent=27 // pred_check
          %p434 = pneg %p185
        $region54: #{tpu_custom_call.1} parent=27 // pred_check_branch
          %436 = sbr.rel (%p434) target = $region56
        $region55: #{tpu_custom_call.1} parent=27 // pred_region
          _
        $region56: #{tpu_custom_call.1} parent=27 // pred_fallthru
          _
      $region28: #{tpu_custom_call.1} parent=5 // pred_fallthru
        _
      %p437 = scmp.le.s32.totalorder 2, %s17
      // Predicated region
      $region57: #{tpu_custom_call.1} parent=5 // pred_check
        %p438 = pneg %p437
      $region58: #{tpu_custom_call.1} parent=5 // pred_check_branch
        %440 = sbr.rel (%p438) target = $region60
      $region59: #{tpu_custom_call.1} parent=5 // pred_region
        %s441 = ssub.s32 %s17, 2
        // Predicated region
        $region61: #{tpu_custom_call.1} parent=59 // pred_check
          %p442 = pneg %p135
        $region62: #{tpu_custom_call.1} parent=59 // pred_check_branch
          %444 = sbr.rel (%p442) target = $region64
        $region63: #{tpu_custom_call.1} parent=59 // pred_region
          %p445 = scmp.lt.s32.totalorder %s30, 1
          %s446 = scalar_select %p445, %s30, 1
          %p447 = scmp.lt.s32.totalorder %s31, 0
          %s448 = scalar_select %p447, %s31, 0
          %s449 = sadd.s32 %s448, %s446
          %s450 = smul.addr %s449, 4
          %s451 = scalar_lea.vmem %s2, %s450
        $region64: #{tpu_custom_call.1} parent=59 // pred_fallthru
          _
        // Predicated region
        $region65: #{tpu_custom_call.1} parent=59 // pred_check
          %p452 = pneg %p163
        $region66: #{tpu_custom_call.1} parent=59 // pred_check_branch
          %454 = sbr.rel (%p452) target = $region68
        $region67: #{tpu_custom_call.1} parent=59 // pred_region
          %p455 = scmp.lt.s32.totalorder %s30, 1
          %s456 = scalar_select %p455, %s30, 1
          %p457 = scmp.lt.s32.totalorder %s31, 0
          %s458 = scalar_select %p457, %s31, 0
          %s459 = sadd.s32 %s458, %s456
          %s460 = smul.addr %s459, 4
          %s461 = scalar_lea.vmem %s3, %s460
        $region68: #{tpu_custom_call.1} parent=59 // pred_fallthru
          _
        // Predicated region
        $region69: #{tpu_custom_call.1} parent=59 // pred_check
          %p462 = pneg %p191
        $region70: #{tpu_custom_call.1} parent=59 // pred_check_branch
          %464 = sbr.rel (%p462) target = $region72
        $region71: #{tpu_custom_call.1} parent=59 // pred_region
          %p465 = scmp.lt.s32.totalorder %s30, 1
          %s466 = scalar_select %p465, %s30, 1
          %p467 = scmp.lt.s32.totalorder %s31, 0
          %s468 = scalar_select %p467, %s31, 0
          %s469 = sadd.s32 %s468, %s466
          %s470 = smul.addr %s469, 4
          %s471 = scalar_lea.vmem %s4, %s470
        $region72: #{tpu_custom_call.1} parent=59 // pred_fallthru
          _
      $region60: #{tpu_custom_call.1} parent=5 // pred_fallthru
        _
    $region6: #{tpu_custom_call.1} parent=1 // loop_footer
      %s21 = sadd.s32 1, %s17
    $region7: #{tpu_custom_call.1} parent=1 // loop_footer_branch
      %16 = sbr.rel target = $region3
    $region8: #{tpu_custom_call.1} parent=1 // loop_exit
      _
    %472 = vsyncpa [#allocation6], 1
    %s473 = scalar_lea.sflag [#allocation6], 1
    %474 = vsyncpa %s473, 1
    %475 = vsyncpa [#allocation8], 1
    %s476 = scalar_lea.sflag [#allocation8], 1
    %477 = vsyncpa %s476, 1

</llo_original>
